<compile_context>
chip_gen: v7x
topology: tpu7x:2x2x1
jax: 0.10.0
libtpu: 0.0.40
codegen_flags: <defaults>
</compile_context>

<pallas_src>
import functools
import math

import jax
import jax.numpy as jnp
from jax.experimental import pallas as pl
from jax.experimental.pallas import tpu as pltpu


def _round_up(x, n):
    return (x + n - 1) // n * n


def _vmem_capacity_bytes():
    """Physical VMEM per TensorCore; conservative 64 MiB (v7x) fallback."""
    try:
        info = pltpu.get_tpu_info()
        cap = getattr(info, "vmem_capacity_bytes", None)
        if cap:
            return int(cap)
    except Exception:
        pass
    return 64 * 1024 * 1024


def _arcmargin_kernel(x_ref, w_ref, lab_ref, o_ref, wn_ref, *,
                      s, cos_m, sin_m, th, mm, tn):
    # x_ref  : (TM, K)   input-feature tile (resident across the class loop)
    # w_ref  : (TN, K)   raw weight-row tile streamed from HBM
    # lab_ref: (TM, 1)   int32 labels
    # o_ref  : (TM, TN)  output logits tile
    # wn_ref : (TN, K)   VMEM scratch: L2-normalized weight tile (compute dtype)
    j = pl.program_id(0)   # class-tile index (outer, "parallel")
    i = pl.program_id(1)   # batch-tile index (inner, "arbitrary")

    # Fused weight-row normalization: done once per class tile (first inner
    # step) and reused across the whole inner batch loop.  Removes the
    # separate full-HBM pass over the (N, K) weight the wrapper used to do.
    @pl.when(i == 0)
    def _():
        w = w_ref[...].astype(jnp.float32)
        ssq = jnp.sum(w * w, axis=1, keepdims=True)           # (TN, 1) XLU reduce
        inv = jax.lax.rsqrt(jnp.maximum(ssq, 1e-24))          # == 1/max(||w||,1e-12)
        wn_ref[...] = (w * inv).astype(wn_ref.dtype)

    # Transposed-RHS contraction (contract last dims of both): native MXU
    # (TM, K) x (TN, K) -> (TM, TN), f32 accumulation, no per-step transpose.
    cos_th = jax.lax.dot_general(
        x_ref[...], wn_ref[...],
        dimension_numbers=(((1,), (1,)), ((), ())),
        preferred_element_type=jnp.float32,
    )
    cos_th = jnp.clip(cos_th, -1.0, 1.0)        # matches cos_th.clamp(-1, 1)

    sin_th = jnp.sqrt(1.0 - cos_th * cos_th)
    cos_th_m = jnp.where(cos_th > th, cos_th * cos_m - sin_th * sin_m,
                         cos_th - mm)

    # One-hot blend as a single select against a loop-invariant column iota.
    col = jax.lax.broadcasted_iota(jnp.int32, cos_th.shape, 1)
    target = lab_ref[...] - j * tn                            # (TM, 1)
    o_ref[...] = (jnp.where(col == target, cos_th_m, cos_th) * s).astype(o_ref.dtype)


def arc_margin_product(inputs, weight, labels, *, s=32.0, m=0.5,
                       compute_dtype=None, out_dtype=jnp.float32):
    """ArcMarginProduct.forward.

    inputs : (B, in_feature)  float32
    weight : (out_feature, in_feature) float32 (kept uncast in HBM)
    labels : (B,) int
    compute_dtype: optional MXU operand dtype (e.g. jnp.bfloat16); the
                   normalized-weight scratch is cast in-kernel, post-matmul
                   math stays f32.
    out_dtype    : logits dtype (bf16 halves output writeback on v5e).
    returns: (B, out_feature) out_dtype
    """
    B, K = inputs.shape
    N, K2 = weight.shape
    assert K == K2

    cd = jnp.dtype(compute_dtype) if compute_dtype is not None else jnp.dtype(inputs.dtype)
    x_item = cd.itemsize
    w_item = jnp.dtype(weight.dtype).itemsize
    out_item = jnp.dtype(out_dtype).itemsize

    # Sublane multiple for the second-minor dim of the input/output blocks.
    sub = 8 if x_item >= 4 else (16 if x_item == 2 else 32)

    # Lane-align K (zero padding changes neither the dots nor the row norms).
    Kp = _round_up(K, 128)

    # ---- tile selection ----------------------------------------------------
    # Whole (padded) batch as a single resident block whenever it is small:
    # inputs/labels are DMA'd once, each weight tile is read exactly once, and
    # each grid step is one large MXU tile.
    tm_full = _round_up(B, sub)
    if tm_full * Kp * x_item <= 4 * 1024 * 1024:
        tm = tm_full
    else:
        tm = min(tm_full, _round_up(256, sub))

    cap = _vmem_capacity_bytes()
    budget = int(cap * 0.8)   # ~51 MiB on v7x (64 MiB), ~102 MiB on v5e/v6e (128 MiB)

    n_al = _round_up(N, 128)

    def footprint(tm_, tn_):
        return (2 * tm_ * Kp * x_item         # input tile (double-buffered)
                + 2 * tn_ * Kp * w_item       # raw weight tile (double-buffered)
                + 2 * tm_ * 4                 # labels
                + 2 * tm_ * tn_ * out_item    # output tile (double-buffered)
                + tn_ * Kp * x_item)          # normalized-weight scratch

    tn = 128
    for cand in (4096, 2048, 1024, 512, 256, 128):
        tn_c = min(cand, n_al)
        if footprint(tm, tn_c) <= budget:
            tn = tn_c
            break
    else:
        tm = min(tm, _round_up(128, sub))     # last-resort shrink for huge K
    # TODO(synk): add a K grid axis + f32 accumulator for very large in_feature
    # (>= 4096) so the weight-tile footprint decouples from K.

    b_pad = _round_up(B, tm)
    n_pad = _round_up(N, tn)

    # ---- operand prep (no per-call copy of the big weight unless padding) ---
    x = inputs.astype(cd) if compute_dtype is not None else inputs
    w = weight
    lab = labels.astype(jnp.int32).reshape(B, 1)

    if Kp != K:
        x = jnp.pad(x, ((0, 0), (0, Kp - K)))
        w = jnp.pad(w, ((0, 0), (0, Kp - K)))
    if b_pad != B:
        x = jnp.pad(x, ((0, b_pad - B), (0, 0)))
        lab = jnp.pad(lab, ((0, b_pad - B), (0, 0)), constant_values=-1)
    if n_pad != N:
        w = jnp.pad(w, ((0, n_pad - N), (0, 0)))

    need = footprint(tm, tn)
    vmem_limit = int(min(budget, max(need + need // 4 + (2 << 20), 16 << 20)))

    kernel = functools.partial(
        _arcmargin_kernel, s=float(s),
        cos_m=math.cos(m), sin_m=math.sin(m),
        th=math.cos(math.pi - m), mm=math.sin(math.pi - m) * m, tn=tn,
    )

    out = pl.pallas_call(
        kernel,
        out_shape=jax.ShapeDtypeStruct((b_pad, n_pad), out_dtype),
        grid_spec=pltpu.PrefetchScalarGridSpec(
            num_scalar_prefetch=0,
            # Class axis OUTER, batch axis INNER: the weight tile's block index
            # is constant across the inner loop, so each weight tile is read
            # from HBM exactly once; with full-batch tm the inputs/labels stay
            # resident for the whole kernel.
            grid=(n_pad // tn, b_pad // tm),
            in_specs=[
                pl.BlockSpec((tm, Kp), lambda j, i: (i, 0)),   # inputs
                pl.BlockSpec((tn, Kp), lambda j, i: (j, 0)),   # raw weight rows
                pl.BlockSpec((tm, 1), lambda j, i: (i, 0)),    # labels
            ],
            out_specs=pl.BlockSpec((tm, tn), lambda j, i: (i, j)),
            scratch_shapes=[pltpu.VMEM((tn, Kp), cd)],         # normalized weights
        ),
        compiler_params=pltpu.CompilerParams(
            dimension_semantics=("parallel", "arbitrary"),
            vmem_limit_bytes=vmem_limit,
        ),
    )(x, w, lab)

    return out[:B, :N]


def _reference(inputs, weight, labels, *, s=32.0, m=0.5):
    cos_m, sin_m = math.cos(m), math.sin(m)
    th = math.cos(math.pi - m)
    mm = math.sin(math.pi - m) * m
    w_n = weight / jnp.maximum(
        jnp.linalg.norm(weight, axis=1, keepdims=True), 1e-12
    )
    cos_th = jnp.clip(inputs @ w_n.T, -1.0, 1.0)
    sin_th = jnp.sqrt(1.0 - cos_th ** 2)
    cos_th_m = jnp.where(cos_th > th, cos_th * cos_m - sin_th * sin_m, cos_th - mm)
    onehot = jax.nn.one_hot(labels, weight.shape[0], dtype=cos_th.dtype)
    return (onehot * cos_th_m + (1.0 - onehot) * cos_th) * s


if __name__ == "__main__":
    # Small deterministic example consistent with the module's forward:
    # inputs (B, in_feature), labels (B,).
    B, IN_FEATURE, OUT_FEATURE = 16, 128, 256

    key = jax.random.PRNGKey(0)
    k_x, k_w, k_l = jax.random.split(key, 3)

    x = jax.random.normal(k_x, (B, IN_FEATURE), dtype=jnp.float32)

    # Deterministic xavier_uniform_ init for weight (out_feature, in_feature).
    bound = math.sqrt(6.0 / (IN_FEATURE + OUT_FEATURE))
    w = jax.random.uniform(
        k_w, (OUT_FEATURE, IN_FEATURE), dtype=jnp.float32,
        minval=-bound, maxval=bound
    )

    labels = jax.random.randint(k_l, (B,), 0, OUT_FEATURE, dtype=jnp.int32)

    out = arc_margin_product(x, w, labels, s=32.0, m=0.5)
    out = jax.block_until_ready(out)

    ref = _reference(x, w, labels, s=32.0, m=0.5)
    assert out.shape == (B, OUT_FEATURE)
    assert jnp.allclose(out, ref, atol=1e-4, rtol=1e-4)

    print("KERNEL_OK")
</pallas_src>

<mosaic_0001>
module attributes {stable_mosaic.version = 11 : i64} {
  func.func @_arcmargin_kernel(%arg0: i32, %arg1: i32, %arg2: memref<16x128xf32, #tpu.memory_space<vmem>>, %arg3: memref<256x128xf32, #tpu.memory_space<vmem>>, %arg4: memref<16x1xi32, #tpu.memory_space<vmem>>, %arg5: memref<16x256xf32, #tpu.memory_space<vmem>>, %arg6: memref<256x128xf32, #tpu.memory_space<vmem>>) attributes {dimension_semantics = [#tpu.dimension_semantics<parallel>, #tpu.dimension_semantics<arbitrary>], iteration_bounds = array<i64: 1, 1>, scalar_prefetch = 0 : i64, scratch_operands = 1 : i64, tpu.core_type = #tpu.core_type<tc>, window_params = [{transform_indices = @transform_0, window_bounds = array<i64: 16, 128>}, {transform_indices = @transform_1, window_bounds = array<i64: 256, 128>}, {transform_indices = @transform_2, window_bounds = array<i64: 16, 1>}, {transform_indices = @transform_3, window_bounds = array<i64: 16, 256>}]} {
    %c0_i32 = arith.constant 0 : i32
    %0 = arith.cmpi eq, %arg1, %c0_i32 : i32
    %1 = arith.extui %0 : i1 to i32
    %c0_i32_0 = arith.constant 0 : i32
    %2 = arith.cmpi ne, %1, %c0_i32_0 : i32
    scf.if %2 {
      %c0_16 = arith.constant 0 : index
      %c0_17 = arith.constant 0 : index
      %35 = vector.load %arg3[%c0_16, %c0_17] : memref<256x128xf32, #tpu.memory_space<vmem>>, vector<256x128xf32>
      %36 = arith.mulf %35, %35 : vector<256x128xf32>
      %cst_18 = arith.constant dense<0.000000e+00> : vector<256xf32>
      %37 = vector.multi_reduction <add>, %36, %cst_18 [1] : vector<256x128xf32> to vector<256xf32>
      %38 = vector.shape_cast %37 : vector<256xf32> to vector<256x1xf32>
      %cst_19 = arith.constant 1.000000e-24 : f32
      %39 = vector.broadcast %cst_19 : f32 to vector<256x1xf32>
      %40 = arith.maximumf %38, %39 : vector<256x1xf32>
      %41 = math.rsqrt %40 : vector<256x1xf32>
      %42 = vector.broadcast %41 : vector<256x1xf32> to vector<256x128xf32>
      %43 = arith.mulf %35, %42 : vector<256x128xf32>
      %c0_20 = arith.constant 0 : index
      %c0_21 = arith.constant 0 : index
      %44 = vector.load %arg6[%c0_20, %c0_21] : memref<256x128xf32, #tpu.memory_space<vmem>>, vector<256x128xf32>
      tpu.vector_store %arg6[%c0_20, %c0_21], %43 {strides = array<i32>} : memref<256x128xf32, #tpu.memory_space<vmem>>, vector<256x128xf32>,
    } else {
    }
    %c0 = arith.constant 0 : index
    %c0_1 = arith.constant 0 : index
    %3 = vector.load %arg2[%c0, %c0_1] : memref<16x128xf32, #tpu.memory_space<vmem>>, vector<16x128xf32>
    %c0_2 = arith.constant 0 : index
    %c0_3 = arith.constant 0 : index
    %4 = vector.load %arg6[%c0_2, %c0_3] : memref<256x128xf32, #tpu.memory_space<vmem>>, vector<256x128xf32>
    %cst = arith.constant dense<0.000000e+00> : vector<16x256xf32>
    %5 = tpu.matmul %3, %4, %cst {dimension_numbers = #tpu.dot_dimension_numbers<[1], [1], [0], [0], [0, 0, 1, 0], [], []>} : vector<16x128xf32>, vector<256x128xf32>, vector<16x256xf32> -> vector<16x256xf32>
    %cst_4 = arith.constant -1.000000e+00 : f32
    %cst_5 = arith.constant 1.000000e+00 : f32
    %6 = vector.broadcast %cst_4 : f32 to vector<16x256xf32>
    %7 = arith.maximumf %6, %5 : vector<16x256xf32>
    %8 = vector.broadcast %cst_5 : f32 to vector<16x256xf32>
    %9 = arith.minimumf %8, %7 : vector<16x256xf32>
    %10 = arith.mulf %9, %9 : vector<16x256xf32>
    %cst_6 = arith.constant 1.000000e+00 : f32
    %11 = vector.broadcast %cst_6 : f32 to vector<16x256xf32>
    %12 = arith.subf %11, %10 : vector<16x256xf32>
    %13 = math.sqrt %12 : vector<16x256xf32>
    %cst_7 = arith.constant -0.87758255 : f32
    %14 = vector.broadcast %cst_7 : f32 to vector<16x256xf32>
    %15 = arith.cmpf ogt, %9, %14 : vector<16x256xf32>
    %cst_8 = arith.constant 0.87758255 : f32
    %16 = vector.broadcast %cst_8 : f32 to vector<16x256xf32>
    %17 = arith.mulf %9, %16 : vector<16x256xf32>
    %cst_9 = arith.constant 0.47942555 : f32
    %18 = vector.broadcast %cst_9 : f32 to vector<16x256xf32>
    %19 = arith.mulf %13, %18 : vector<16x256xf32>
    %20 = arith.subf %17, %19 : vector<16x256xf32>
    %cst_10 = arith.constant 0.239712775 : f32
    %21 = vector.broadcast %cst_10 : f32 to vector<16x256xf32>
    %22 = arith.subf %9, %21 : vector<16x256xf32>
    %23 = arith.select %15, %20, %22 : vector<16x256xi1>, vector<16x256xf32>
    %24 = tpu.iota {dimensions = array<i32: 1>} : vector<16x256xi32>
    %c0_11 = arith.constant 0 : index
    %c0_12 = arith.constant 0 : index
    %25 = vector.load %arg4[%c0_11, %c0_12] : memref<16x1xi32, #tpu.memory_space<vmem>>, vector<16x1xi32>
    %c256_i32 = arith.constant 256 : i32
    %26 = arith.muli %arg0, %c256_i32 : i32
    %27 = vector.broadcast %26 : i32 to vector<16x1xi32>
    %28 = arith.subi %25, %27 : vector<16x1xi32>
    %29 = vector.broadcast %28 : vector<16x1xi32> to vector<16x256xi32>
    %30 = arith.cmpi eq, %24, %29 : vector<16x256xi32>
    %31 = arith.select %30, %23, %9 : vector<16x256xi1>, vector<16x256xf32>
    %cst_13 = arith.constant 3.200000e+01 : f32
    %32 = vector.broadcast %cst_13 : f32 to vector<16x256xf32>
    %33 = arith.mulf %31, %32 : vector<16x256xf32>
    %c0_14 = arith.constant 0 : index
    %c0_15 = arith.constant 0 : index
    %34 = vector.load %arg5[%c0_14, %c0_15] : memref<16x256xf32, #tpu.memory_space<vmem>>, vector<16x256xf32>
    tpu.vector_store %arg5[%c0_14, %c0_15], %33 {strides = array<i32>} : memref<16x256xf32, #tpu.memory_space<vmem>>, vector<16x256xf32>,
    return
  }
  func.func @transform_0(%arg0: i32, %arg1: i32) -> (i32, i32) {
    %c0_i32 = arith.constant 0 : i32
    %c0_i32_0 = arith.constant 0 : i32
    return %arg1, %c0_i32 : i32, i32
  }
  func.func @transform_1(%arg0: i32, %arg1: i32) -> (i32, i32) {
    %c0_i32 = arith.constant 0 : i32
    %c0_i32_0 = arith.constant 0 : i32
    return %arg0, %c0_i32 : i32, i32
  }
  func.func @transform_2(%arg0: i32, %arg1: i32) -> (i32, i32) {
    %c0_i32 = arith.constant 0 : i32
    %c0_i32_0 = arith.constant 0 : i32
    return %arg1, %c0_i32 : i32, i32
  }
  func.func @transform_3(%arg0: i32, %arg1: i32) -> (i32, i32) {
    %c0_i32 = arith.constant 0 : i32
    return %arg1, %arg0 : i32, i32
  }
}

</mosaic_0001>

<llo_original>
// kernel: tpu_custom_call.1
$region0: #{tpu_custom_call.1}
  #allocation0 [shape = 'u32[]', space=smem, size = 0x4, offset = 0x4, fixed_abs, tag = 'smem constant byte address 0x4 - core index']
  #allocation1 [shape = 'u32[144,128]{1,0:T(1,128)}', space=vmem, size = 0x12000, scoped, tag = 'internal scratch']
  #allocation2 [shape = 'f32[256,128]{1,0:T(8,128)}', space=vmem, size = 0x20000, scoped, tag = 'scratch operand']
  %s0 = inlined_call_operand.vmem [shape: f32[16,128], index: 0, kind: input, shape index: {}]
  %s1 = inlined_call_operand.hbm [shape: f32[256,128], index: 1, kind: input, shape index: {}]
  %s2 = inlined_call_operand.vmem [shape: s32[16,1], index: 2, kind: input, shape index: {}]
  %s3 = inlined_call_operand.hbm [shape: f32[16,256], index: 3, kind: output, shape index: {}]
  %s4 = sld [smem:[#allocation0]]
  $region30: #{tpu_custom_call.1} parent=0
    _
  %s6 = ssub.s32 1, %s4
  %s7 = scalar_select 0, %s6, %s4
  $region1: #{tpu_custom_call.1} parent=0
    #allocation3 [shape = 'u8[131072]{0}', space=vmem, size = 0x20000, scoped, tag = 'input window, operand 1, single buffered']
    #allocation4 [shape = 's32[1]{0}', space=sflag, size = 0x4, scoped, tag = 'scoped memory for tpu_custom_call.1']
    #allocation5 [shape = 's32[1]{0}', space=sflag, size = 0x4, scoped, tag = 'scoped memory for tpu_custom_call.1']
    #allocation6 [shape = 'u8[16384]{0}', space=vmem, size = 0x4000, scoped, tag = 'output window, operand 0, single buffered']
    %8 = vsyncpa [#allocation4], 0
    %9 = vsyncpa [#allocation5], 0
    // Predicated region
    $region2: #{tpu_custom_call.1} parent=1 // pred_check
      _
    $region3: #{tpu_custom_call.1} parent=1 // pred_check_branch
      %11 = sbr.rel (0) target = $region5
    $region4: #{tpu_custom_call.1} parent=1 // pred_region
      _
    $region5: #{tpu_custom_call.1} parent=1 // pred_fallthru
      _
    // Predicated region
    $region6: #{tpu_custom_call.1} parent=1 // pred_check
      _
    $region7: #{tpu_custom_call.1} parent=1 // pred_check_branch
      %13 = sbr.rel (0) target = $region9
    $region8: #{tpu_custom_call.1} parent=1 // pred_region
      %s15 = ssub.s32 4096, 4096
      %16 = vsyncadd [#allocation4], %s15
      %s17 = sshll.u32 [#allocation3], 4
      %s18 = int_to_ptr.vmem [resolvable:$true] %s17
      %23 = dma.hbm_to_vmem [thread:$0]  %s1, 4096, %s18, [#allocation4], 128, 128, 8
    $region9: #{tpu_custom_call.1} parent=1 // pred_fallthru
      _
    // Predicated region
    $region10: #{tpu_custom_call.1} parent=1 // pred_check
      _
    $region11: #{tpu_custom_call.1} parent=1 // pred_check_branch
      %25 = sbr.rel (0) target = $region13
    $region12: #{tpu_custom_call.1} parent=1 // pred_region
      _
    $region13: #{tpu_custom_call.1} parent=1 // pred_fallthru
      _
    // Predicated region
    $region14: #{tpu_custom_call.1} parent=1 // pred_check
      _
    $region15: #{tpu_custom_call.1} parent=1 // pred_check_branch
      %27 = sbr.rel (0) target = $region17
    $region16: #{tpu_custom_call.1} parent=1 // pred_region
      %28 = dma.done [#allocation4], 4096
    $region17: #{tpu_custom_call.1} parent=1 // pred_fallthru
      _
    %p29 = scmp.eq.s32.totalorder 0, 0
    // Predicated region
    $region18: #{tpu_custom_call.1} parent=1 // pred_check
      %p30 = pneg %p29
    $region19: #{tpu_custom_call.1} parent=1 // pred_check_branch
      %32 = sbr.rel (%p30) target = $region21
    $region20: #{tpu_custom_call.1} parent=1 // pred_region
      %v33 = vld [vmem:[#allocation3] sm:$0xff]
      %v34 = vld [vmem:[#allocation3 + $0x8] sm:$0xff]
      %v35 = vld [vmem:[#allocation3 + $0x10] sm:$0xff]
      %v36 = vld [vmem:[#allocation3 + $0x18] sm:$0xff]
      %v37 = vld [vmem:[#allocation3 + $0x20] sm:$0xff]
      %v38 = vld [vmem:[#allocation3 + $0x28] sm:$0xff]
      %v39 = vld [vmem:[#allocation3 + $0x30] sm:$0xff]
      %v40 = vld [vmem:[#allocation3 + $0x38] sm:$0xff]
      %v41 = vld [vmem:[#allocation3 + $0x40] sm:$0xff]
      %v42 = vld [vmem:[#allocation3 + $0x48] sm:$0xff]
      %v43 = vld [vmem:[#allocation3 + $0x50] sm:$0xff]
      %v44 = vld [vmem:[#allocation3 + $0x58] sm:$0xff]
      %v45 = vld [vmem:[#allocation3 + $0x60] sm:$0xff]
      %v46 = vld [vmem:[#allocation3 + $0x68] sm:$0xff]
      %v47 = vld [vmem:[#allocation3 + $0x70] sm:$0xff]
      %v48 = vld [vmem:[#allocation3 + $0x78] sm:$0xff]
      %v49 = vld [vmem:[#allocation3 + $0x80] sm:$0xff]
      %v50 = vld [vmem:[#allocation3 + $0x88] sm:$0xff]
      %v51 = vld [vmem:[#allocation3 + $0x90] sm:$0xff]
      %v52 = vld [vmem:[#allocation3 + $0x98] sm:$0xff]
      %v53 = vld [vmem:[#allocation3 + $0xa0] sm:$0xff]
      %v54 = vld [vmem:[#allocation3 + $0xa8] sm:$0xff]
      %v55 = vld [vmem:[#allocation3 + $0xb0] sm:$0xff]
      %v56 = vld [vmem:[#allocation3 + $0xb8] sm:$0xff]
      %v57 = vld [vmem:[#allocation3 + $0xc0] sm:$0xff]
      %v58 = vld [vmem:[#allocation3 + $0xc8] sm:$0xff]
      %v59 = vld [vmem:[#allocation3 + $0xd0] sm:$0xff]
      %v60 = vld [vmem:[#allocation3 + $0xd8] sm:$0xff]
      %v61 = vld [vmem:[#allocation3 + $0xe0] sm:$0xff]
      %v62 = vld [vmem:[#allocation3 + $0xe8] sm:$0xff]
      %v63 = vld [vmem:[#allocation3 + $0xf0] sm:$0xff]
      %v64 = vld [vmem:[#allocation3 + $0xf8] sm:$0xff]
      %v65 = vmul.f32 %v33, %v33
      %v66 = vmul.f32 %v34, %v34
      %v67 = vmul.f32 %v35, %v35
      %v68 = vmul.f32 %v36, %v36
      %v69 = vmul.f32 %v37, %v37
      %v70 = vmul.f32 %v38, %v38
      %v71 = vmul.f32 %v39, %v39
      %v72 = vmul.f32 %v40, %v40
      %v73 = vmul.f32 %v41, %v41
      %v74 = vmul.f32 %v42, %v42
      %v75 = vmul.f32 %v43, %v43
      %v76 = vmul.f32 %v44, %v44
      %v77 = vmul.f32 %v45, %v45
      %v78 = vmul.f32 %v46, %v46
      %v79 = vmul.f32 %v47, %v47
      %v80 = vmul.f32 %v48, %v48
      %v81 = vmul.f32 %v49, %v49
      %v82 = vmul.f32 %v50, %v50
      %v83 = vmul.f32 %v51, %v51
      %v84 = vmul.f32 %v52, %v52
      %v85 = vmul.f32 %v53, %v53
      %v86 = vmul.f32 %v54, %v54
      %v87 = vmul.f32 %v55, %v55
      %v88 = vmul.f32 %v56, %v56
      %v89 = vmul.f32 %v57, %v57
      %v90 = vmul.f32 %v58, %v58
      %v91 = vmul.f32 %v59, %v59
      %v92 = vmul.f32 %v60, %v60
      %v93 = vmul.f32 %v61, %v61
      %v94 = vmul.f32 %v62, %v62
      %v95 = vmul.f32 %v63, %v63
      %v96 = vmul.f32 %v64, %v64
      %97 = vadd.xlane.f32.xlu0 %v65
      %v98 = vpop.xlane.xlu0 %97
      %99 = vadd.xlane.f32.xlu0 %v66
      %v100 = vpop.xlane.xlu0 %99
      %101 = vadd.xlane.f32.xlu0 %v67
      %v102 = vpop.xlane.xlu0 %101
      %103 = vadd.xlane.f32.xlu0 %v68
      %v104 = vpop.xlane.xlu0 %103
      %105 = vadd.xlane.f32.xlu0 %v69
      %v106 = vpop.xlane.xlu0 %105
      %107 = vadd.xlane.f32.xlu0 %v70
      %v108 = vpop.xlane.xlu0 %107
      %109 = vadd.xlane.f32.xlu0 %v71
      %v110 = vpop.xlane.xlu0 %109
      %111 = vadd.xlane.f32.xlu0 %v72
      %v112 = vpop.xlane.xlu0 %111
      %113 = vadd.xlane.f32.xlu0 %v73
      %v114 = vpop.xlane.xlu0 %113
      %115 = vadd.xlane.f32.xlu0 %v74
      %v116 = vpop.xlane.xlu0 %115
      %117 = vadd.xlane.f32.xlu0 %v75
      %v118 = vpop.xlane.xlu0 %117
      %119 = vadd.xlane.f32.xlu0 %v76
      %v120 = vpop.xlane.xlu0 %119
      %121 = vadd.xlane.f32.xlu0 %v77
      %v122 = vpop.xlane.xlu0 %121
      %123 = vadd.xlane.f32.xlu0 %v78
      %v124 = vpop.xlane.xlu0 %123
      %125 = vadd.xlane.f32.xlu0 %v79
      %v126 = vpop.xlane.xlu0 %125
      %127 = vadd.xlane.f32.xlu0 %v80
      %v128 = vpop.xlane.xlu0 %127
      %129 = vadd.xlane.f32.xlu0 %v81
      %v130 = vpop.xlane.xlu0 %129
      %131 = vadd.xlane.f32.xlu0 %v82
      %v132 = vpop.xlane.xlu0 %131
      %133 = vadd.xlane.f32.xlu0 %v83
      %v134 = vpop.xlane.xlu0 %133
      %135 = vadd.xlane.f32.xlu0 %v84
      %v136 = vpop.xlane.xlu0 %135
      %137 = vadd.xlane.f32.xlu0 %v85
      %v138 = vpop.xlane.xlu0 %137
      %139 = vadd.xlane.f32.xlu0 %v86
      %v140 = vpop.xlane.xlu0 %139
      %141 = vadd.xlane.f32.xlu0 %v87
      %v142 = vpop.xlane.xlu0 %141
      %143 = vadd.xlane.f32.xlu0 %v88
      %v144 = vpop.xlane.xlu0 %143
      %145 = vadd.xlane.f32.xlu0 %v89
      %v146 = vpop.xlane.xlu0 %145
      %147 = vadd.xlane.f32.xlu0 %v90
      %v148 = vpop.xlane.xlu0 %147
      %149 = vadd.xlane.f32.xlu0 %v91
      %v150 = vpop.xlane.xlu0 %149
      %151 = vadd.xlane.f32.xlu0 %v92
      %v152 = vpop.xlane.xlu0 %151
      %153 = vadd.xlane.f32.xlu0 %v93
      %v154 = vpop.xlane.xlu0 %153
      %155 = vadd.xlane.f32.xlu0 %v94
      %v156 = vpop.xlane.xlu0 %155
      %157 = vadd.xlane.f32.xlu0 %v95
      %v158 = vpop.xlane.xlu0 %157
      %159 = vadd.xlane.f32.xlu0 %v96
      %v160 = vpop.xlane.xlu0 %159
      %v161 = vmax.f32 %v98, 1e-24
      %v162 = vmax.f32 %v100, 1e-24
      %v163 = vmax.f32 %v102, 1e-24
      %v164 = vmax.f32 %v104, 1e-24
      %v165 = vmax.f32 %v106, 1e-24
      %v166 = vmax.f32 %v108, 1e-24
      %v167 = vmax.f32 %v110, 1e-24
      %v168 = vmax.f32 %v112, 1e-24
      %v169 = vmax.f32 %v114, 1e-24
      %v170 = vmax.f32 %v116, 1e-24
      %v171 = vmax.f32 %v118, 1e-24
      %v172 = vmax.f32 %v120, 1e-24
      %v173 = vmax.f32 %v122, 1e-24
      %v174 = vmax.f32 %v124, 1e-24
      %v175 = vmax.f32 %v126, 1e-24
      %v176 = vmax.f32 %v128, 1e-24
      %v177 = vmax.f32 %v130, 1e-24
      %v178 = vmax.f32 %v132, 1e-24
      %v179 = vmax.f32 %v134, 1e-24
      %v180 = vmax.f32 %v136, 1e-24
      %v181 = vmax.f32 %v138, 1e-24
      %v182 = vmax.f32 %v140, 1e-24
      %v183 = vmax.f32 %v142, 1e-24
      %v184 = vmax.f32 %v144, 1e-24
      %v185 = vmax.f32 %v146, 1e-24
      %v186 = vmax.f32 %v148, 1e-24
      %v187 = vmax.f32 %v150, 1e-24
      %v188 = vmax.f32 %v152, 1e-24
      %v189 = vmax.f32 %v154, 1e-24
      %v190 = vmax.f32 %v156, 1e-24
      %v191 = vmax.f32 %v158, 1e-24
      %v192 = vmax.f32 %v160, 1e-24
      %v193 = vrsqrt.pop %v161
      %v194 = vrsqrt.pop %v162
      %v195 = vrsqrt.pop %v163
      %v196 = vrsqrt.pop %v164
      %v197 = vrsqrt.pop %v165
      %v198 = vrsqrt.pop %v166
      %v199 = vrsqrt.pop %v167
      %v200 = vrsqrt.pop %v168
      %v201 = vrsqrt.pop %v169
      %v202 = vrsqrt.pop %v170
      %v203 = vrsqrt.pop %v171
      %v204 = vrsqrt.pop %v172
      %v205 = vrsqrt.pop %v173
      %v206 = vrsqrt.pop %v174
      %v207 = vrsqrt.pop %v175
      %v208 = vrsqrt.pop %v176
      %v209 = vrsqrt.pop %v177
      %v210 = vrsqrt.pop %v178
      %v211 = vrsqrt.pop %v179
      %v212 = vrsqrt.pop %v180
      %v213 = vrsqrt.pop %v181
      %v214 = vrsqrt.pop %v182
      %v215 = vrsqrt.pop %v183
      %v216 = vrsqrt.pop %v184
      %v217 = vrsqrt.pop %v185
      %v218 = vrsqrt.pop %v186
      %v219 = vrsqrt.pop %v187
      %v220 = vrsqrt.pop %v188
      %v221 = vrsqrt.pop %v189
      %v222 = vrsqrt.pop %v190
      %v223 = vrsqrt.pop %v191
      %v224 = vrsqrt.pop %v192
      %v225 = vmul.f32 %v33, %v193
      %v226 = vmul.f32 %v34, %v194
      %v227 = vmul.f32 %v35, %v195
      %v228 = vmul.f32 %v36, %v196
      %v229 = vmul.f32 %v37, %v197
      %v230 = vmul.f32 %v38, %v198
      %v231 = vmul.f32 %v39, %v199
      %v232 = vmul.f32 %v40, %v200
      %v233 = vmul.f32 %v41, %v201
      %v234 = vmul.f32 %v42, %v202
      %v235 = vmul.f32 %v43, %v203
      %v236 = vmul.f32 %v44, %v204
      %v237 = vmul.f32 %v45, %v205
      %v238 = vmul.f32 %v46, %v206
      %v239 = vmul.f32 %v47, %v207
      %v240 = vmul.f32 %v48, %v208
      %v241 = vmul.f32 %v49, %v209
      %v242 = vmul.f32 %v50, %v210
      %v243 = vmul.f32 %v51, %v211
      %v244 = vmul.f32 %v52, %v212
      %v245 = vmul.f32 %v53, %v213
      %v246 = vmul.f32 %v54, %v214
      %v247 = vmul.f32 %v55, %v215
      %v248 = vmul.f32 %v56, %v216
      %v249 = vmul.f32 %v57, %v217
      %v250 = vmul.f32 %v58, %v218
      %v251 = vmul.f32 %v59, %v219
      %v252 = vmul.f32 %v60, %v220
      %v253 = vmul.f32 %v61, %v221
      %v254 = vmul.f32 %v62, %v222
      %v255 = vmul.f32 %v63, %v223
      %v256 = vmul.f32 %v64, %v224
      %257 = vst [vmem:[#allocation2] sm:$0xff] %v225
      %258 = vst [vmem:[#allocation2 + $0x8] sm:$0xff] %v226
      %259 = vst [vmem:[#allocation2 + $0x10] sm:$0xff] %v227
      %260 = vst [vmem:[#allocation2 + $0x18] sm:$0xff] %v228
      %261 = vst [vmem:[#allocation2 + $0x20] sm:$0xff] %v229
      %262 = vst [vmem:[#allocation2 + $0x28] sm:$0xff] %v230
      %263 = vst [vmem:[#allocation2 + $0x30] sm:$0xff] %v231
      %264 = vst [vmem:[#allocation2 + $0x38] sm:$0xff] %v232
      %265 = vst [vmem:[#allocation2 + $0x40] sm:$0xff] %v233
      %266 = vst [vmem:[#allocation2 + $0x48] sm:$0xff] %v234
      %267 = vst [vmem:[#allocation2 + $0x50] sm:$0xff] %v235
      %268 = vst [vmem:[#allocation2 + $0x58] sm:$0xff] %v236
      %269 = vst [vmem:[#allocation2 + $0x60] sm:$0xff] %v237
      %270 = vst [vmem:[#allocation2 + $0x68] sm:$0xff] %v238
      %271 = vst [vmem:[#allocation2 + $0x70] sm:$0xff] %v239
      %272 = vst [vmem:[#allocation2 + $0x78] sm:$0xff] %v240
      %273 = vst [vmem:[#allocation2 + $0x80] sm:$0xff] %v241
      %274 = vst [vmem:[#allocation2 + $0x88] sm:$0xff] %v242
      %275 = vst [vmem:[#allocation2 + $0x90] sm:$0xff] %v243
      %276 = vst [vmem:[#allocation2 + $0x98] sm:$0xff] %v244
      %277 = vst [vmem:[#allocation2 + $0xa0] sm:$0xff] %v245
      %278 = vst [vmem:[#allocation2 + $0xa8] sm:$0xff] %v246
      %279 = vst [vmem:[#allocation2 + $0xb0] sm:$0xff] %v247
      %280 = vst [vmem:[#allocation2 + $0xb8] sm:$0xff] %v248
      %281 = vst [vmem:[#allocation2 + $0xc0] sm:$0xff] %v249
      %282 = vst [vmem:[#allocation2 + $0xc8] sm:$0xff] %v250
      %283 = vst [vmem:[#allocation2 + $0xd0] sm:$0xff] %v251
      %284 = vst [vmem:[#allocation2 + $0xd8] sm:$0xff] %v252
      %285 = vst [vmem:[#allocation2 + $0xe0] sm:$0xff] %v253
      %286 = vst [vmem:[#allocation2 + $0xe8] sm:$0xff] %v254
      %287 = vst [vmem:[#allocation2 + $0xf0] sm:$0xff] %v255
      %288 = vst [vmem:[#allocation2 + $0xf8] sm:$0xff] %v256
    $region21: #{tpu_custom_call.1} parent=1 // pred_fallthru
      _
    %v289 = vld [vmem:[%s0] sm:$0xff]
    %v290 = vld [vmem:[%s0 + $0x8] sm:$0xff]
    %v291 = vld [vmem:[#allocation2] sm:$0xff]
    %v292 = vld [vmem:[#allocation2 + $0x8] sm:$0xff]
    %v293 = vld [vmem:[#allocation2 + $0x10] sm:$0xff]
    %v294 = vld [vmem:[#allocation2 + $0x18] sm:$0xff]
    %v295 = vld [vmem:[#allocation2 + $0x20] sm:$0xff]
    %v296 = vld [vmem:[#allocation2 + $0x28] sm:$0xff]
    %v297 = vld [vmem:[#allocation2 + $0x30] sm:$0xff]
    %v298 = vld [vmem:[#allocation2 + $0x38] sm:$0xff]
    %v299 = vld [vmem:[#allocation2 + $0x40] sm:$0xff]
    %v300 = vld [vmem:[#allocation2 + $0x48] sm:$0xff]
    %v301 = vld [vmem:[#allocation2 + $0x50] sm:$0xff]
    %v302 = vld [vmem:[#allocation2 + $0x58] sm:$0xff]
    %v303 = vld [vmem:[#allocation2 + $0x60] sm:$0xff]
    %v304 = vld [vmem:[#allocation2 + $0x68] sm:$0xff]
    %v305 = vld [vmem:[#allocation2 + $0x70] sm:$0xff]
    %v306 = vld [vmem:[#allocation2 + $0x78] sm:$0xff]
    %v307 = vld [vmem:[#allocation2 + $0x80] sm:$0xff]
    %v308 = vld [vmem:[#allocation2 + $0x88] sm:$0xff]
    %v309 = vld [vmem:[#allocation2 + $0x90] sm:$0xff]
    %v310 = vld [vmem:[#allocation2 + $0x98] sm:$0xff]
    %v311 = vld [vmem:[#allocation2 + $0xa0] sm:$0xff]
    %v312 = vld [vmem:[#allocation2 + $0xa8] sm:$0xff]
    %v313 = vld [vmem:[#allocation2 + $0xb0] sm:$0xff]
    %v314 = vld [vmem:[#allocation2 + $0xb8] sm:$0xff]
    %v315 = vld [vmem:[#allocation2 + $0xc0] sm:$0xff]
    %v316 = vld [vmem:[#allocation2 + $0xc8] sm:$0xff]
    %v317 = vld [vmem:[#allocation2 + $0xd0] sm:$0xff]
    %v318 = vld [vmem:[#allocation2 + $0xd8] sm:$0xff]
    %v319 = vld [vmem:[#allocation2 + $0xe0] sm:$0xff]
    %v320 = vld [vmem:[#allocation2 + $0xe8] sm:$0xff]
    %v321 = vld [vmem:[#allocation2 + $0xf0] sm:$0xff]
    %v322 = vld [vmem:[#allocation2 + $0xf8] sm:$0xff]
    %323 = vmatprep.subr.mxu0 0.0
    %324 = vmatpush1.xpose.msra.mxu0 %v291
    %325 = vmatprep.subr.mxu0 0.0
    %326 = vmatpush1.xpose.msra.mxu0 %v292
    %327 = vmatprep.subr.mxu0 0.0
    %328 = vmatpush1.xpose.msra.mxu0 %v293
    %329 = vmatprep.subr.mxu0 0.0
    %330 = vmatpush1.xpose.msra.mxu0 %v294
    %331 = vmatprep.subr.mxu0 0.0
    %332 = vmatpush1.xpose.msra.mxu0 %v295
    %333 = vmatprep.subr.mxu0 0.0
    %334 = vmatpush1.xpose.msra.mxu0 %v296
    %335 = vmatprep.subr.mxu0 0.0
    %336 = vmatpush1.xpose.msra.mxu0 %v297
    %337 = vmatprep.subr.mxu0 0.0
    %338 = vmatpush1.xpose.msra.mxu0 %v298
    %339 = vmatprep.subr.mxu0 0.0
    %340 = vmatpush1.xpose.msra.mxu0 %v299
    %341 = vmatprep.subr.mxu0 0.0
    %342 = vmatpush1.xpose.msra.mxu0 %v300
    %343 = vmatprep.subr.mxu0 0.0
    %344 = vmatpush1.xpose.msra.mxu0 %v301
    %345 = vmatprep.subr.mxu0 0.0
    %346 = vmatpush1.xpose.msra.mxu0 %v302
    %347 = vmatprep.subr.mxu0 0.0
    %348 = vmatpush1.xpose.msra.mxu0 %v303
    %349 = vmatprep.subr.mxu0 0.0
    %350 = vmatpush1.xpose.msra.mxu0 %v304
    %351 = vmatprep.subr.mxu0 0.0
    %352 = vmatpush1.xpose.msra.mxu0 %v305
    %353 = vmatprep.subr.mxu0 0.0
    %354 = vmatpush1.xpose.msra.mxu0 %v306
    %355 = vmatprep.subr.mxu0 0.0
    %356 = vmatpush1.xpose.msra.mxu0 %v307
    %357 = vmatprep.subr.mxu0 0.0
    %358 = vmatpush1.xpose.msra.mxu0 %v308
    %359 = vmatprep.subr.mxu0 0.0
    %360 = vmatpush1.xpose.msra.mxu0 %v309
    %361 = vmatprep.subr.mxu0 0.0
    %362 = vmatpush1.xpose.msra.mxu0 %v310
    %363 = vmatprep.subr.mxu0 0.0
    %364 = vmatpush1.xpose.msra.mxu0 %v311
    %365 = vmatprep.subr.mxu0 0.0
    %366 = vmatpush1.xpose.msra.mxu0 %v312
    %367 = vmatprep.subr.mxu0 0.0
    %368 = vmatpush1.xpose.msra.mxu0 %v313
    %369 = vmatprep.subr.mxu0 0.0
    %370 = vmatpush1.xpose.msra.mxu0 %v314
    %371 = vmatprep.subr.mxu0 0.0
    %372 = vmatpush1.xpose.msra.mxu0 %v315
    %373 = vmatprep.subr.mxu0 0.0
    %374 = vmatpush1.xpose.msra.mxu0 %v316
    %375 = vmatprep.subr.mxu0 0.0
    %376 = vmatpush1.xpose.msra.mxu0 %v317
    %377 = vmatprep.subr.mxu0 0.0
    %378 = vmatpush1.xpose.msra.mxu0 %v318
    %379 = vmatprep.subr.mxu0 0.0
    %380 = vmatpush1.xpose.msra.mxu0 %v319
    %381 = vmatprep.subr.mxu0 0.0
    %382 = vmatpush1.xpose.msra.mxu0 %v320
    %383 = vmatprep.subr.mxu0 0.0
    %384 = vmatpush1.xpose.msra.mxu0 %v321
    %385 = vmatprep.subr.mxu0 0.0
    %386 = vmatpush1.xpose.msra.mxu0 %v322
    %387 = vmatprep.mubr.f32.mxu0 0.0
    %388 = vmatmul.mubr.f32.gmra.mrb[0].mxu0 %v289
    %v389 = vpop.f32.mrb[0].mxu0
    %v390 = vadd.f32 0.0, %v389
    %v391 = vpop.f32.mrb[0].mxu0
    %v392 = vadd.f32 0.0, %v391
    %393 = vmatprep.mubr.f32.mxu0 0.0
    %394 = vmatmul.mubr.f32.gmra.mrb[0].mxu0 %v290
    %v395 = vpop.f32.mrb[0].mxu0
    %v396 = vadd.f32 0.0, %v395
    %v397 = vpop.f32.mrb[0].mxu0
    %v398 = vadd.f32 0.0, %v397
    %399 = vdwg.mxu0
    %v400 = vmax.f32 %v390, -1.0
    %v401 = vmax.f32 %v392, -1.0
    %v402 = vmax.f32 %v396, -1.0
    %v403 = vmax.f32 %v398, -1.0
    %v404 = vmin.f32 %v400, 1.0
    %v405 = vmin.f32 %v401, 1.0
    %v406 = vmin.f32 %v402, 1.0
    %v407 = vmin.f32 %v403, 1.0
    %v408 = vmul.f32 %v404, %v404
    %v409 = vmul.f32 %v405, %v405
    %v410 = vmul.f32 %v406, %v406
    %v411 = vmul.f32 %v407, %v407
    %v412 = vsub.f32 1.0, %v408
    %v413 = vsub.f32 1.0, %v409
    %v414 = vsub.f32 1.0, %v410
    %v415 = vsub.f32 1.0, %v411
    %v416 = vrsqrt.pop %v412
    %v417 = vmul.f32 %v412, %v416
    %vm418 = vcmp.eq.f32.partialorder %v412, inf
    %v419 = vsel %vm418, %v412, %v417
    %vm420 = vcmp.eq.f32.partialorder %v412, 0.0
    %v421 = vand.u32 %v412, 2147483648
    %v422 = vsel %vm420, %v421, %v419
    %v423 = vrsqrt.pop %v413
    %v424 = vmul.f32 %v413, %v423
    %vm425 = vcmp.eq.f32.partialorder %v413, inf
    %v426 = vsel %vm425, %v413, %v424
    %vm427 = vcmp.eq.f32.partialorder %v413, 0.0
    %v428 = vand.u32 %v413, 2147483648
    %v429 = vsel %vm427, %v428, %v426
    %v430 = vrsqrt.pop %v414
    %v431 = vmul.f32 %v414, %v430
    %vm432 = vcmp.eq.f32.partialorder %v414, inf
    %v433 = vsel %vm432, %v414, %v431
    %vm434 = vcmp.eq.f32.partialorder %v414, 0.0
    %v435 = vand.u32 %v414, 2147483648
    %v436 = vsel %vm434, %v435, %v433
    %v437 = vrsqrt.pop %v415
    %v438 = vmul.f32 %v415, %v437
    %vm439 = vcmp.eq.f32.partialorder %v415, inf
    %v440 = vsel %vm439, %v415, %v438
    %vm441 = vcmp.eq.f32.partialorder %v415, 0.0
    %v442 = vand.u32 %v415, 2147483648
    %v443 = vsel %vm441, %v442, %v440
    %vm444 = vcmp.gt.f32.partialorder %v404, -0.87758255
    %vm445 = vcmp.gt.f32.partialorder %v405, -0.87758255
    %vm446 = vcmp.gt.f32.partialorder %v406, -0.87758255
    %vm447 = vcmp.gt.f32.partialorder %v407, -0.87758255
    %v448 = vmul.f32 %v404, 0.87758255
    %v449 = vmul.f32 %v405, 0.87758255
    %v450 = vmul.f32 %v406, 0.87758255
    %v451 = vmul.f32 %v407, 0.87758255
    %v452 = vmul.f32 %v422, 0.47942555
    %v453 = vmul.f32 %v429, 0.47942555
    %v454 = vmul.f32 %v436, 0.47942555
    %v455 = vmul.f32 %v443, 0.47942555
    %v456 = vsub.f32 %v448, %v452
    %v457 = vsub.f32 %v449, %v453
    %v458 = vsub.f32 %v450, %v454
    %v459 = vsub.f32 %v451, %v455
    %v460 = vsub.f32 %v404, 0.23971277
    %v461 = vsub.f32 %v405, 0.23971277
    %v462 = vsub.f32 %v406, 0.23971277
    %v463 = vsub.f32 %v407, 0.23971277
    %v464 = vsel %vm444, %v456, %v460
    %v465 = vsel %vm445, %v457, %v461
    %v466 = vsel %vm446, %v458, %v462
    %v467 = vsel %vm447, %v459, %v463
    %v468 = vlaneseq
    %v469 = vand.u32 %v468, 127
    %v470 = vadd.s32 %v469, 128
    %v471 = vld [vmem:[%s2] sm:$0xff]
    %v472 = vld [vmem:[%s2 + $0x8] sm:$0xff]
    %s473 = smul.u32 0, 256
    %v474 = vstv %s473
    %v475 = vsub.s32 %v471, %v474
    %v476 = vsub.s32 %v472, %v474
    %477 = vset.pattern.permute.xlu0 0
    %478 = vperm.xlu0 %477, %v475
    %v479 = vpop.permute.xlu0 %478
    %480 = vset.pattern.permute.xlu0 0
    %481 = vperm.xlu0 %480, %v476
    %v482 = vpop.permute.xlu0 %481
    %vm483 = vcmp.eq.s32.totalorder %v469, %v479
    %vm484 = vcmp.eq.s32.totalorder %v470, %v479
    %vm485 = vcmp.eq.s32.totalorder %v469, %v482
    %vm486 = vcmp.eq.s32.totalorder %v470, %v482
    %v487 = vsel %vm483, %v464, %v404
    %v488 = vsel %vm484, %v465, %v405
    %v489 = vsel %vm485, %v466, %v406
    %v490 = vsel %vm486, %v467, %v407
    %v491 = vmul.f32 %v487, 32.0
    %v492 = vmul.f32 %v488, 32.0
    %v493 = vmul.f32 %v489, 32.0
    %v494 = vmul.f32 %v490, 32.0
    %495 = vst [vmem:[#allocation6] sm:$0xff] %v491
    %496 = vst [vmem:[#allocation6 + $0x8] sm:$0xff] %v492
    %497 = vst [vmem:[#allocation6 + $0x10] sm:$0xff] %v493
    %498 = vst [vmem:[#allocation6 + $0x18] sm:$0xff] %v494
    // Predicated region
    $region22: #{tpu_custom_call.1} parent=1 // pred_check
      _
    $region23: #{tpu_custom_call.1} parent=1 // pred_check_branch
      %500 = sbr.rel (0) target = $region25
    $region24: #{tpu_custom_call.1} parent=1 // pred_region
      %s502 = ssub.s32 512, 512
      %503 = vsyncadd [#allocation5], %s502
      %s504 = sshll.u32 [#allocation6], 4
      %s505 = int_to_ptr.vmem [resolvable:$true] %s504
      %510 = dma.vmem_to_hbm [thread:$0]  %s505, 512, %s3, [#allocation5], 256, 256, 16
    $region25: #{tpu_custom_call.1} parent=1 // pred_fallthru
      _
    // Predicated region
    $region26: #{tpu_custom_call.1} parent=1 // pred_check
      _
    $region27: #{tpu_custom_call.1} parent=1 // pred_check_branch
      %512 = sbr.rel (0) target = $region29
    $region28: #{tpu_custom_call.1} parent=1 // pred_region
      %513 = dma.done [#allocation5], 512
    $region29: #{tpu_custom_call.1} parent=1 // pred_fallthru
      _
    %514 = vsyncpa [#allocation4], 1
    %515 = vsyncpa [#allocation5], 1

</llo_original>
